<compile_context>
chip_gen: v5e
topology: v5e:2x2
jax: 0.10.0
libtpu: 0.0.40
codegen_flags: <defaults>
</compile_context>

<pallas_src>
import functools

import jax
import jax.numpy as jnp
from jax import lax
from jax.experimental import pallas as pl
from jax.experimental.pallas import tpu as pltpu


def _instance_norm_kernel(x_ref, gamma_ref, beta_ref, o_ref, *, eps, rows):
    # x_ref:     (rows, HW)   -- `rows` instances, spatial dims flattened onto lanes
    # gamma_ref: (NC_pad, 1)  -- full per-row scale, resident in VMEM (constant block)
    # beta_ref:  (NC_pad, 1)  -- full per-row shift, resident in VMEM (constant block)
    # o_ref:     (rows, HW)
    i = pl.program_id(0)
    r0 = pl.multiple_of(i * rows, rows)

    x = x_ref[...].astype(jnp.float32)

    # Per-instance (per-row) mean / biased variance over the flattened spatial dim.
    mean = jnp.mean(x, axis=-1, keepdims=True)                      # (rows, 1)
    centered = x - mean
    var = jnp.mean(centered * centered, axis=-1, keepdims=True)     # unbiased=False

    y = centered * lax.rsqrt(var + eps)

    g = gamma_ref[pl.ds(r0, rows), :].astype(jnp.float32)           # (rows, 1)
    b = beta_ref[pl.ds(r0, rows), :].astype(jnp.float32)            # (rows, 1)
    o_ref[...] = (y * g + b).astype(o_ref.dtype)


def _choose_row_block(nc, hw, itemsize, target_bytes=2 * 1024 * 1024):
    """Pick rows-per-block: ~2 MiB tiles, multiple of 8, >=2 grid steps if possible."""
    rows = (target_bytes // max(hw * itemsize, 1)) // 8 * 8
    rows = max(8, int(rows))
    nc_pad8 = ((nc + 7) // 8) * 8
    rows = min(rows, nc_pad8)
    # v7x has 2 TensorCores: prefer at least 2 parallel grid steps when there is
    # enough work; harmless on v5e/v6e.
    if nc_pad8 >= 16 and rows >= nc_pad8:
        rows = max(8, (nc_pad8 // 2) // 8 * 8)
    return rows


def instance_norm(x, gamma, beta, eps=1e-5):
    """InstanceNorm2d forward. x: (N, C, H, W); gamma, beta: (1, C, 1, 1)."""
    N, C, H, W = x.shape
    assert gamma.shape == (1, C, 1, 1) and beta.shape == (1, C, 1, 1)
    NC, HW = N * C, H * W

    # Lane-dense layout: one (n, c) instance per row, spatial dims on lanes.
    x2 = x.reshape(NC, HW)
    g_rows = jnp.broadcast_to(gamma.reshape(1, C), (N, C)).reshape(NC, 1)
    b_rows = jnp.broadcast_to(beta.reshape(1, C), (N, C)).reshape(NC, 1)

    rows = _choose_row_block(NC, HW, x.dtype.itemsize)
    nc_pad = ((NC + rows - 1) // rows) * rows
    if nc_pad != NC:
        pad = nc_pad - NC
        x2 = jnp.pad(x2, ((0, pad), (0, 0)))
        g_rows = jnp.pad(g_rows, ((0, pad), (0, 0)), constant_values=1.0)
        b_rows = jnp.pad(b_rows, ((0, pad), (0, 0)))

    grid = (nc_pad // rows,)
    kernel = functools.partial(_instance_norm_kernel, eps=float(eps), rows=rows)

    out2 = pl.pallas_call(
        kernel,
        out_shape=jax.ShapeDtypeStruct((nc_pad, HW), x.dtype),
        grid_spec=pltpu.PrefetchScalarGridSpec(
            num_scalar_prefetch=0,
            grid=grid,
            in_specs=[
                # Multi-instance lane-dense tile; last block dims = full array dims
                # or (8,128)-aligned, so the tiling rule holds for any H, W.
                pl.BlockSpec((rows, HW), lambda i: (i, 0)),
                # gamma/beta: full arrays with a constant block index -> fetched
                # once and kept resident in VMEM (no per-step scalar DMAs).
                pl.BlockSpec((nc_pad, 1), lambda i: (0, 0)),
                pl.BlockSpec((nc_pad, 1), lambda i: (0, 0)),
            ],
            out_specs=pl.BlockSpec((rows, HW), lambda i: (i, 0)),
        ),
        compiler_params=pltpu.CompilerParams(
            dimension_semantics=("parallel",),
            # Explicit scoped-VMEM budget: ~2 MiB tiles double-buffered for
            # input + output stay well under this on v5e/v6e/v7x.
            vmem_limit_bytes=32 * 1024 * 1024,
        ),
    )(x2, g_rows, b_rows)

    return out2[:NC].reshape(N, C, H, W)


def instance_norm_ref(x, gamma, beta, eps=1e-5):
    """Pure-JAX reference mirroring the PyTorch forward."""
    mean = jnp.mean(x, axis=(2, 3), keepdims=True)
    var = jnp.var(x, axis=(2, 3), keepdims=True)  # biased (unbiased=False)
    y = (x - mean) / jnp.sqrt(var + eps)
    return y * gamma + beta


if __name__ == "__main__":
    key = jax.random.PRNGKey(0)

    N, C, H, W = 2, 4, 16, 16
    x = jax.random.normal(key, (N, C, H, W), dtype=jnp.float32)

    # Parameter init matching the module's __init__: gamma = ones, beta = zeros.
    gamma = jnp.ones((1, C, 1, 1), dtype=jnp.float32)
    beta = jnp.zeros((1, C, 1, 1), dtype=jnp.float32)

    out = instance_norm(x, gamma, beta, eps=1e-5)
    out = jax.block_until_ready(out)

    ref = instance_norm_ref(x, gamma, beta, eps=1e-5)
    assert out.shape == (N, C, H, W)
    assert jnp.allclose(out, ref, atol=1e-5, rtol=1e-5)

    print("KERNEL_OK")
</pallas_src>

<mosaic_0001>
module attributes {stable_mosaic.version = 11 : i64} {
  func.func @_instance_norm_kernel(%arg0: i32, %arg1: memref<8x256xf32, #tpu.memory_space<vmem>>, %arg2: memref<8x1xf32, #tpu.memory_space<vmem>>, %arg3: memref<8x1xf32, #tpu.memory_space<vmem>>, %arg4: memref<8x256xf32, #tpu.memory_space<vmem>>) attributes {dimension_semantics = [#tpu.dimension_semantics<parallel>], iteration_bounds = array<i64: 1>, scalar_prefetch = 0 : i64, scratch_operands = 0 : i64, tpu.core_type = #tpu.core_type<tc>, window_params = [{transform_indices = @transform_0, window_bounds = array<i64: 8, 256>}, {pipeline_mode = #tpu.pipeline_mode<synchronous>, transform_indices = @transform_1, window_bounds = array<i64: 8, 1>}, {pipeline_mode = #tpu.pipeline_mode<synchronous>, transform_indices = @transform_2, window_bounds = array<i64: 8, 1>}, {transform_indices = @transform_3, window_bounds = array<i64: 8, 256>}]} {
    %c8_i32 = arith.constant 8 : i32
    %0 = arith.muli %arg0, %c8_i32 : i32
    %1 = tpu.assume_multiple %0, 8 : i32
    %c0 = arith.constant 0 : index
    %c0_0 = arith.constant 0 : index
    %2 = vector.load %arg1[%c0, %c0_0] : memref<8x256xf32, #tpu.memory_space<vmem>>, vector<8x256xf32>
    %cst = arith.constant dense<0.000000e+00> : vector<8xf32>
    %3 = vector.multi_reduction <add>, %2, %cst [1] : vector<8x256xf32> to vector<8xf32>
    %4 = vector.shape_cast %3 : vector<8xf32> to vector<8x1xf32>
    %cst_1 = arith.constant 2.560000e+02 : f32
    %5 = vector.broadcast %cst_1 : f32 to vector<8x1xf32>
    %6 = arith.divf %4, %5 : vector<8x1xf32>
    %7 = vector.broadcast %6 : vector<8x1xf32> to vector<8x256xf32>
    %8 = arith.subf %2, %7 : vector<8x256xf32>
    %9 = arith.mulf %8, %8 : vector<8x256xf32>
    %cst_2 = arith.constant dense<0.000000e+00> : vector<8xf32>
    %10 = vector.multi_reduction <add>, %9, %cst_2 [1] : vector<8x256xf32> to vector<8xf32>
    %11 = vector.shape_cast %10 : vector<8xf32> to vector<8x1xf32>
    %cst_3 = arith.constant 2.560000e+02 : f32
    %12 = vector.broadcast %cst_3 : f32 to vector<8x1xf32>
    %13 = arith.divf %11, %12 : vector<8x1xf32>
    %cst_4 = arith.constant 9.99999974E-6 : f32
    %14 = vector.broadcast %cst_4 : f32 to vector<8x1xf32>
    %15 = arith.addf %13, %14 : vector<8x1xf32>
    %16 = math.rsqrt %15 : vector<8x1xf32>
    %17 = vector.broadcast %16 : vector<8x1xf32> to vector<8x256xf32>
    %18 = arith.mulf %8, %17 : vector<8x256xf32>
    %19 = arith.index_cast %1 : i32 to index
    %c0_5 = arith.constant 0 : index
    %20 = vector.load %arg2[%19, %c0_5] : memref<8x1xf32, #tpu.memory_space<vmem>>, vector<8x1xf32>
    %21 = arith.index_cast %1 : i32 to index
    %c0_6 = arith.constant 0 : index
    %22 = vector.load %arg3[%21, %c0_6] : memref<8x1xf32, #tpu.memory_space<vmem>>, vector<8x1xf32>
    %23 = vector.broadcast %20 : vector<8x1xf32> to vector<8x256xf32>
    %24 = arith.mulf %18, %23 : vector<8x256xf32>
    %25 = vector.broadcast %22 : vector<8x1xf32> to vector<8x256xf32>
    %26 = arith.addf %24, %25 : vector<8x256xf32>
    %c0_7 = arith.constant 0 : index
    %c0_8 = arith.constant 0 : index
    %27 = vector.load %arg4[%c0_7, %c0_8] : memref<8x256xf32, #tpu.memory_space<vmem>>, vector<8x256xf32>
    tpu.vector_store %arg4[%c0_7, %c0_8], %26 {strides = array<i32>} : memref<8x256xf32, #tpu.memory_space<vmem>>, vector<8x256xf32>,
    return
  }
  func.func @transform_0(%arg0: i32) -> (i32, i32) {
    %c0_i32 = arith.constant 0 : i32
    %c0_i32_0 = arith.constant 0 : i32
    return %arg0, %c0_i32 : i32, i32
  }
  func.func @transform_1(%arg0: i32) -> (i32, i32) {
    %c0_i32 = arith.constant 0 : i32
    %c0_i32_0 = arith.constant 0 : i32
    %c0_i32_1 = arith.constant 0 : i32
    return %c0_i32, %c0_i32_0 : i32, i32
  }
  func.func @transform_2(%arg0: i32) -> (i32, i32) {
    %c0_i32 = arith.constant 0 : i32
    %c0_i32_0 = arith.constant 0 : i32
    %c0_i32_1 = arith.constant 0 : i32
    return %c0_i32, %c0_i32_0 : i32, i32
  }
  func.func @transform_3(%arg0: i32) -> (i32, i32) {
    %c0_i32 = arith.constant 0 : i32
    %c0_i32_0 = arith.constant 0 : i32
    return %arg0, %c0_i32 : i32, i32
  }
}

</mosaic_0001>

<llo_original>
// kernel: tpu_custom_call.1
$region0: #{tpu_custom_call.1}
  #allocation0 [shape = 'u32[]', space=smem, size = 0x4, offset = 0x4, fixed_abs, tag = 'smem constant byte address 0x4 - core index']
  #allocation1 [shape = 'u32[72,128]{1,0:T(1,128)}', space=vmem, size = 0x9000, scoped, tag = 'internal scratch']
  %s0 = inlined_call_operand.vmem [shape: f32[8,256], index: 0, kind: input, shape index: {}]
  %s1 = inlined_call_operand.vmem [shape: f32[8,1], index: 1, kind: input, shape index: {}]
  %s2 = inlined_call_operand.vmem [shape: f32[8,1], index: 2, kind: input, shape index: {}]
  %s3 = inlined_call_operand.hbm [shape: f32[8,256], index: 3, kind: output, shape index: {}]
  %s4 = sld [smem:[#allocation0]]
  $region22: #{tpu_custom_call.1} parent=0
    _
  %s6 = ssub.s32 1, %s4
  %s7 = scalar_select 0, %s6, %s4
  $region1: #{tpu_custom_call.1} parent=0
    #allocation2 [shape = 'u8[8192]{0}', space=vmem, size = 0x2000, scoped, tag = 'output window, operand 0, single buffered']
    #allocation3 [shape = 's32[1]{0}', space=sflag, size = 0x4, scoped, tag = 'scoped memory for tpu_custom_call.1']
    %8 = vsyncpa [#allocation3], 0
    // Predicated region
    $region2: #{tpu_custom_call.1} parent=1 // pred_check
      _
    $region3: #{tpu_custom_call.1} parent=1 // pred_check_branch
      %10 = sbr.rel (0) target = $region5
    $region4: #{tpu_custom_call.1} parent=1 // pred_region
      _
    $region5: #{tpu_custom_call.1} parent=1 // pred_fallthru
      _
    // Predicated region
    $region6: #{tpu_custom_call.1} parent=1 // pred_check
      _
    $region7: #{tpu_custom_call.1} parent=1 // pred_check_branch
      %12 = sbr.rel (0) target = $region9
    $region8: #{tpu_custom_call.1} parent=1 // pred_region
      _
    $region9: #{tpu_custom_call.1} parent=1 // pred_fallthru
      _
    // Predicated region
    $region10: #{tpu_custom_call.1} parent=1 // pred_check
      _
    $region11: #{tpu_custom_call.1} parent=1 // pred_check_branch
      %14 = sbr.rel (0) target = $region13
    $region12: #{tpu_custom_call.1} parent=1 // pred_region
      _
    $region13: #{tpu_custom_call.1} parent=1 // pred_fallthru
      _
    %s15 = smul.u32 0, 8
    %v16 = vld [vmem:[%s0] sm:$0xff]
    %v17 = vld [vmem:[%s0 + $0x8] sm:$0xff]
    %v18 = vadd.f32 %v16, %v17
    %19 = vadd.xlane.f32.xlu0 %v18
    %v20 = vpop.xlane.xlu0 %19
    %v21 = vrcp.pop 256.0
    %v22 = vmul.f32 256.0, %v21
    %v23 = vsub.f32 1.0, %v22
    %v24 = vmul.f32 %v21, %v23
    %v25 = vadd.f32 %v21, %v24
    %vm26 = vweird.f32 %v21
    %v27 = vsel %vm26, %v21, %v25
    %v28 = vmul.f32 %v20, %v27
    %v29 = vsub.f32 %v16, %v28
    %v30 = vsub.f32 %v17, %v28
    %v31 = vmul.f32 %v29, %v29
    %v32 = vmul.f32 %v30, %v30
    %v33 = vadd.f32 %v31, %v32
    %34 = vadd.xlane.f32.xlu0 %v33
    %v35 = vpop.xlane.xlu0 %34
    %v36 = vmul.f32 %v35, %v27
    %v37 = vadd.f32 %v36, 1e-05
    %v38 = vrsqrt.pop %v37
    %v39 = vmul.f32 %v38, %v37
    %v40 = vmul.f32 %v39, %v38
    %v41 = vmul.f32 0.5, %v40
    %v42 = vsub.f32 1.5, %v41
    %v43 = vmul.f32 %v38, %v42
    %vm44 = vweird.f32 %v37
    %vm45 = vweird.f32 %v38
    %vm46 = vmor %vm44, %vm45
    %v47 = vsel %vm46, %v38, %v43
    %v48 = vmul.f32 %v29, %v47
    %v49 = vmul.f32 %v30, %v47
    %s50 = scalar_lea.vmem %s1, %s15
    %v51 = vld [vmem:[%s50] sm:$0xff]
    %s52 = scalar_lea.vmem %s2, %s15
    %v53 = vld [vmem:[%s52] sm:$0xff]
    %55 = vset.pattern.permute.xlu0 0
    %56 = vperm.xlu0 %55, %v51
    %v57 = vpop.permute.xlu0 %56
    %v59 = vmul.f32 %v48, %v57
    %v60 = vmul.f32 %v49, %v57
    %62 = vset.pattern.permute.xlu0 0
    %63 = vperm.xlu0 %62, %v53
    %v64 = vpop.permute.xlu0 %63
    %v66 = vadd.f32 %v59, %v64
    %v67 = vadd.f32 %v60, %v64
    %68 = vst [vmem:[#allocation2] sm:$0xff] %v66
    %69 = vst [vmem:[#allocation2 + $0x8] sm:$0xff] %v67
    // Predicated region
    $region14: #{tpu_custom_call.1} parent=1 // pred_check
      _
    $region15: #{tpu_custom_call.1} parent=1 // pred_check_branch
      %71 = sbr.rel (0) target = $region17
    $region16: #{tpu_custom_call.1} parent=1 // pred_region
      %73 = vsyncadd [#allocation3], 0
      %s75 = sshll.u32 [#allocation2], 4
      %s76 = int_to_ptr.vmem [resolvable:$true] %s75
      %s77 = sshll.u32 %s3, 4
      %s78 = int_to_ptr.hbm [resolvable:$true] %s77
      %80 = dma.vmem_to_hbm [thread:$0]  %s76, 256, %s78, [#allocation3]
    $region17: #{tpu_custom_call.1} parent=1 // pred_fallthru
      _
    // Predicated region
    $region18: #{tpu_custom_call.1} parent=1 // pred_check
      _
    $region19: #{tpu_custom_call.1} parent=1 // pred_check_branch
      %82 = sbr.rel (0) target = $region21
    $region20: #{tpu_custom_call.1} parent=1 // pred_region
      %84 = dma.done [#allocation3], 256
    $region21: #{tpu_custom_call.1} parent=1 // pred_fallthru
      _
    %85 = vsyncpa [#allocation3], 1

</llo_original>
